<compile_context>
chip_gen: v7x
topology: tpu7x:2x2x1
jax: 0.10.0
libtpu: 0.0.40
codegen_flags: <defaults>
</compile_context>

<pallas_src>
import functools
import math

import jax
import jax.numpy as jnp
from jax.experimental import pallas as pl
from jax.experimental.pallas import tpu as pltpu


_INV_SQRT2 = 1.0 / math.sqrt(2.0)
_SQRT_2_OVER_PI = math.sqrt(2.0 / math.pi)


def _round_up(x, m):
    return ((x + m - 1) // m) * m


def _cdiv(a, b):
    return -(-a // b)


def _vmem_capacity_bytes():
    """Physical VMEM per TensorCore; falls back to 128 MiB if unqueryable."""
    try:
        return int(pltpu.get_tpu_info().vmem_capacity_bytes)
    except Exception:
        return 128 * 1024 * 1024


def _spec(shape, index_map, buffers=None):
    """BlockSpec with an optional buffer-count hint (safe fallback if unsupported)."""
    if buffers is not None and hasattr(pl, "Buffered"):
        try:
            return pl.BlockSpec(shape, index_map, pipeline_mode=pl.Buffered(buffers))
        except (TypeError, ValueError):
            pass
    return pl.BlockSpec(shape, index_map)


def _projector_kernel(x_ref, w1_ref, b1_ref, w2_ref, b2_ref, o_ref, h_ref, *,
                      approximate_gelu):
    # Grid: (row tile i, linear_2 output-column tile j); j is the inner axis.
    # linear_1 + GELU runs once per row tile (j == 0) into the compute-dtype
    # scratch h_ref, then is reused by every output-column tile.
    @pl.when(pl.program_id(1) == 0)
    def _():
        h = jnp.dot(x_ref[...], w1_ref[...], preferred_element_type=jnp.float32)
        h = h + b1_ref[...]
        if approximate_gelu:
            # tanh approximation (runs on the EUP); slight deviation from nn.GELU().
            inner = jnp.float32(_SQRT_2_OVER_PI) * (h + jnp.float32(0.044715) * h * h * h)
            g = 0.5 * h * (1.0 + jnp.tanh(inner))
        else:
            # exact GELU: 0.5 * x * (1 + erf(x / sqrt(2)))  (matches nn.GELU())
            g = 0.5 * h * (1.0 + jax.lax.erf(h * jnp.float32(_INV_SQRT2)))
        h_ref[...] = g.astype(h_ref.dtype)

    out = jnp.dot(h_ref[...], w2_ref[...], preferred_element_type=jnp.float32)
    out = out + b2_ref[...]
    o_ref[...] = out.astype(o_ref.dtype)


def omchat_projector(image_features, w1, b1, w2, b2, *,
                     tile_rows=None,
                     compute_dtype=jnp.bfloat16,
                     approximate_gelu=False,
                     vmem_budget_bytes=None):
    """image_features: (batch, seq, vision_hidden).

    w1: (vision_hidden, text_hidden), b1: (text_hidden,)
    w2: (text_hidden, text_hidden),   b2: (text_hidden,)
    Weights are stored (in_features, out_features), i.e. x @ W (== torch x @ W.T).
    """
    batch, seq, vision_hidden = image_features.shape
    v_in, text_hidden = w1.shape
    assert v_in == vision_hidden
    assert w2.shape == (text_hidden, text_hidden)
    assert b1.shape == (text_hidden,) and b2.shape == (text_hidden,)

    out_dtype = image_features.dtype
    n_rows = batch * seq

    # Lane-dense padding of feature dims (no-op when already multiples of 128).
    Vp = _round_up(vision_hidden, 128)
    Tp = _round_up(text_hidden, 128)

    cdt_size = jnp.dtype(compute_dtype).itemsize
    out_size = jnp.dtype(out_dtype).itemsize

    vmem_cap = _vmem_capacity_bytes()
    small_vmem = vmem_cap < (96 << 20)          # v7x-class parts (64 MiB per TC)
    if vmem_budget_bytes is None:
        # ~20 MiB of headroom below physical VMEM; on 128 MiB parts this keeps
        # w2 fully resident at production text_hidden, ~44 MiB on v7x.
        vmem_budget_bytes = max(min(vmem_cap - (20 << 20), 104 << 20), 16 << 20)

    # ---- row tiling (balanced to the token count, 128-row aligned) --------
    def pick_row_tile(target):
        target = max(8, _round_up(int(target), 8))
        n_row_tiles = max(1, _cdiv(n_rows, target))
        t = _round_up(_cdiv(n_rows, n_row_tiles), 128)
        t = min(t, _round_up(n_rows, 8))
        return max(8, t)

    # ---- linear_2 output-column tiling (resident buffers fit VMEM budget) -
    def pick_col_tiling(tile):
        def est(tn, n_col):
            w2_bufs = 1 if n_col == 1 else 2
            return (2 * tile * Vp * cdt_size          # x tile (double buffered)
                    + Vp * Tp * cdt_size              # w1 (resident, 1 buffer)
                    + Tp * 4                          # b1 (f32, 1 buffer)
                    + w2_bufs * Tp * tn * cdt_size    # w2 column tile
                    + w2_bufs * tn * 4                # b2 tile
                    + 2 * tile * tn * out_size        # out tile (double buffered)
                    + tile * Tp * cdt_size)           # GELU(h) scratch (compute dtype)
        lane_blocks = Tp // 128
        n_col = 1
        while est(Tp // n_col, n_col) > vmem_budget_bytes and n_col < lane_blocks:
            nxt = n_col + 1
            while lane_blocks % nxt != 0:
                nxt += 1
            n_col = nxt
        tn = Tp // n_col
        return n_col, tn, est(tn, n_col)

    if tile_rows is None:
        tile_rows = 512
    tile = pick_row_tile(tile_rows)
    n_col_tiles, tn, est_bytes = pick_col_tiling(tile)

    # Column-tiled regime (w2 re-streamed once per row tile): bigger row tiles
    # halve that HBM traffic and the per-grid-step overhead.
    if n_col_tiles > 1 and tile < 1024 and n_rows > tile:
        tile2 = pick_row_tile(max(int(tile_rows), 1024))
        if tile2 > tile:
            n2, tn2, est2 = pick_col_tiling(tile2)
            if est2 <= vmem_budget_bytes:
                tile, n_col_tiles, tn, est_bytes = tile2, n2, tn2, est2

    # v7x: 2 TensorCores shard the "parallel" row axis; ensure >= 2 row tiles
    # so the second core is not idle on small/medium token counts.
    if small_vmem and _cdiv(n_rows, tile) < 2 and tile > 8 and n_rows > 8:
        tile = max(8, _round_up(_cdiv(tile, 2), 8))
        n_col_tiles, tn, est_bytes = pick_col_tiling(tile)

    n_rows_p = _round_up(n_rows, tile)
    grid = (n_rows_p // tile, n_col_tiles)

    # VMEM limit: estimated footprint + headroom, never above physical VMEM.
    vmem_limit = int(min(max(est_bytes + (16 << 20), 32 << 20),
                         vmem_cap - (8 << 20)))

    # Zero-pad operands (zeros leave the math unchanged) and cast to the MXU
    # compute dtype; biases stay f32 (added to the f32 accumulator).
    x2d = image_features.reshape(n_rows, vision_hidden)
    x2d = jnp.pad(x2d, ((0, n_rows_p - n_rows), (0, Vp - vision_hidden)))
    x2d = x2d.astype(compute_dtype)
    w1_p = jnp.pad(w1, ((0, Vp - vision_hidden), (0, Tp - text_hidden))).astype(compute_dtype)
    w2_p = jnp.pad(w2, ((0, Tp - text_hidden), (0, Tp - text_hidden))).astype(compute_dtype)
    b1_p = jnp.pad(b1, (0, Tp - text_hidden)).reshape(1, Tp).astype(jnp.float32)
    b2_p = jnp.pad(b2, (0, Tp - text_hidden)).reshape(1, Tp).astype(jnp.float32)

    # w2 is re-read once per row tile only when column-tiled.
    w2_reads = grid[0] if n_col_tiles > 1 else 1
    cost = pl.CostEstimate(
        flops=2 * n_rows_p * (Vp + Tp) * Tp,
        transcendentals=n_rows_p * Tp,
        bytes_accessed=(x2d.size * cdt_size
                        + w1_p.size * cdt_size
                        + w2_p.size * cdt_size * w2_reads
                        + (b1_p.size + b2_p.size) * 4
                        + n_rows_p * Tp * out_size),
    )

    kernel = functools.partial(_projector_kernel, approximate_gelu=approximate_gelu)

    out2d = pl.pallas_call(
        kernel,
        out_shape=jax.ShapeDtypeStruct((n_rows_p, Tp), out_dtype),
        grid_spec=pltpu.PrefetchScalarGridSpec(
            num_scalar_prefetch=0,
            grid=grid,
            in_specs=[
                pl.BlockSpec((tile, Vp), lambda i, j: (i, 0)),          # x row tile
                _spec((Vp, Tp), lambda i, j: (0, 0), buffers=1),        # w1 (resident)
                _spec((1, Tp), lambda i, j: (0, 0), buffers=1),         # b1 (resident)
                _spec((Tp, tn), lambda i, j: (0, j),
                      buffers=1 if n_col_tiles == 1 else None),         # w2 column tile
                _spec((1, tn), lambda i, j: (0, j),
                      buffers=1 if n_col_tiles == 1 else None),         # b2 column tile
            ],
            out_specs=pl.BlockSpec((tile, tn), lambda i, j: (i, j)),
            scratch_shapes=[pltpu.VMEM((tile, Tp), compute_dtype)],     # GELU(h)
        ),
        compiler_params=pltpu.CompilerParams(
            dimension_semantics=("parallel", "arbitrary"),
            vmem_limit_bytes=vmem_limit,
        ),
        cost_estimate=cost,
    )(x2d, w1_p, b1_p, w2_p, b2_p)

    return out2d[:n_rows, :text_hidden].reshape(batch, seq, text_hidden)


def _reference(image_features, w1, b1, w2, b2):
    h = image_features @ w1 + b1
    h = jax.nn.gelu(h, approximate=False)
    return h @ w2 + b2


if __name__ == "__main__":
    # Small shapes consistent with the module:
    #   vision_config.hidden_size = 32, text_config.hidden_size = 64
    batch, seq = 2, 8
    vision_hidden, text_hidden = 32, 64

    key = jax.random.PRNGKey(0)
    k_x, k_w1, k_b1, k_w2, k_b2 = jax.random.split(key, 5)

    image_features = jax.random.normal(k_x, (batch, seq, vision_hidden), jnp.float32)

    # Deterministic synthetic parameters (mimic Linear's fan-in scaling).
    bound1 = 1.0 / math.sqrt(vision_hidden)
    w1 = jax.random.uniform(k_w1, (vision_hidden, text_hidden), jnp.float32, -bound1, bound1)
    b1 = jax.random.uniform(k_b1, (text_hidden,), jnp.float32, -bound1, bound1)

    bound2 = 1.0 / math.sqrt(text_hidden)
    w2 = jax.random.uniform(k_w2, (text_hidden, text_hidden), jnp.float32, -bound2, bound2)
    b2 = jax.random.uniform(k_b2, (text_hidden,), jnp.float32, -bound2, bound2)

    ref = _reference(image_features, w1, b1, w2, b2)

    # f32 datapath: tight correctness check against the reference (exact GELU).
    out_f32 = omchat_projector(image_features, w1, b1, w2, b2,
                               compute_dtype=jnp.float32)
    out_f32 = jax.block_until_ready(out_f32)
    assert out_f32.shape == (batch, seq, text_hidden)
    assert jnp.allclose(out_f32, ref, atol=1e-5, rtol=1e-5)

    # bf16 datapath (default fast path; f32 accumulation): loose check.
    out_bf16 = omchat_projector(image_features, w1, b1, w2, b2)
    out_bf16 = jax.block_until_ready(out_bf16)
    assert out_bf16.shape == (batch, seq, text_hidden)
    assert jnp.allclose(out_bf16, ref, atol=1e-1, rtol=1e-1)

    # Opt-in tanh-approx GELU (EUP path), f32 datapath: small deviation allowed.
    out_tanh = omchat_projector(image_features, w1, b1, w2, b2,
                                compute_dtype=jnp.float32, approximate_gelu=True)
    out_tanh = jax.block_until_ready(out_tanh)
    assert jnp.allclose(out_tanh, ref, atol=1e-2, rtol=1e-2)

    print("KERNEL_OK")
</pallas_src>

<mosaic_0001>
module attributes {stable_mosaic.version = 11 : i64} {
  func.func @_projector_kernel(%arg0: i32, %arg1: i32, %arg2: memref<16x128xf32, #tpu.memory_space<vmem>>, %arg3: memref<128x128xf32, #tpu.memory_space<vmem>>, %arg4: memref<1x128xf32, #tpu.memory_space<vmem>>, %arg5: memref<128x128xf32, #tpu.memory_space<vmem>>, %arg6: memref<1x128xf32, #tpu.memory_space<vmem>>, %arg7: memref<16x128xf32, #tpu.memory_space<vmem>>, %arg8: memref<16x128xf32, #tpu.memory_space<vmem>>) attributes {dimension_semantics = [#tpu.dimension_semantics<parallel>, #tpu.dimension_semantics<arbitrary>], iteration_bounds = array<i64: 1, 1>, scalar_prefetch = 0 : i64, scratch_operands = 1 : i64, tpu.core_type = #tpu.core_type<tc>, window_params = [{transform_indices = @transform_0, window_bounds = array<i64: 16, 128>}, {pipeline_mode = #tpu.pipeline_mode<synchronous>, transform_indices = @transform_1, window_bounds = array<i64: 128, 128>}, {pipeline_mode = #tpu.pipeline_mode<synchronous>, transform_indices = @transform_2, window_bounds = array<i64: 1, 128>}, {pipeline_mode = #tpu.pipeline_mode<synchronous>, transform_indices = @transform_3, window_bounds = array<i64: 128, 128>}, {pipeline_mode = #tpu.pipeline_mode<synchronous>, transform_indices = @transform_4, window_bounds = array<i64: 1, 128>}, {transform_indices = @transform_5, window_bounds = array<i64: 16, 128>}]} {
    %c0_i32 = arith.constant 0 : i32
    %0 = arith.cmpi eq, %arg1, %c0_i32 : i32
    %1 = arith.extui %0 : i1 to i32
    %c0_i32_0 = arith.constant 0 : i32
    %2 = arith.cmpi ne, %1, %c0_i32_0 : i32
    scf.if %2 {
      %c0_8 = arith.constant 0 : index
      %c0_9 = arith.constant 0 : index
      %10 = vector.load %arg2[%c0_8, %c0_9] : memref<16x128xf32, #tpu.memory_space<vmem>>, vector<16x128xf32>
      %c0_10 = arith.constant 0 : index
      %c0_11 = arith.constant 0 : index
      %11 = vector.load %arg3[%c0_10, %c0_11] : memref<128x128xf32, #tpu.memory_space<vmem>>, vector<128x128xf32>
      %cst_12 = arith.constant dense<0.000000e+00> : vector<16x128xf32>
      %12 = tpu.matmul %10, %11, %cst_12 {dimension_numbers = #tpu.dot_dimension_numbers<[1], [0], [0], [1], [0, 0, 1, 1], [], []>} : vector<16x128xf32>, vector<128x128xf32>, vector<16x128xf32> -> vector<16x128xf32>
      %c0_13 = arith.constant 0 : index
      %c0_14 = arith.constant 0 : index
      %13 = vector.load %arg4[%c0_13, %c0_14] : memref<1x128xf32, #tpu.memory_space<vmem>>, vector<1x128xf32>
      %14 = vector.broadcast %13 : vector<1x128xf32> to vector<16x128xf32>
      %15 = arith.addf %12, %14 : vector<16x128xf32>
      %cst_15 = arith.constant 5.000000e-01 : f32
      %16 = vector.broadcast %cst_15 : f32 to vector<16x128xf32>
      %17 = arith.mulf %16, %15 : vector<16x128xf32>
      %cst_16 = arith.constant 0.707106769 : f32
      %18 = vector.broadcast %cst_16 : f32 to vector<16x128xf32>
      %19 = arith.mulf %15, %18 : vector<16x128xf32>
      %20 = math.erf %19 : vector<16x128xf32>
      %cst_17 = arith.constant 1.000000e+00 : f32
      %21 = vector.broadcast %cst_17 : f32 to vector<16x128xf32>
      %22 = arith.addf %21, %20 : vector<16x128xf32>
      %23 = arith.mulf %17, %22 : vector<16x128xf32>
      %c0_18 = arith.constant 0 : index
      %c0_19 = arith.constant 0 : index
      %24 = vector.load %arg8[%c0_18, %c0_19] : memref<16x128xf32, #tpu.memory_space<vmem>>, vector<16x128xf32>
      tpu.vector_store %arg8[%c0_18, %c0_19], %23 {strides = array<i32>} : memref<16x128xf32, #tpu.memory_space<vmem>>, vector<16x128xf32>,
    } else {
    }
    %c0 = arith.constant 0 : index
    %c0_1 = arith.constant 0 : index
    %3 = vector.load %arg8[%c0, %c0_1] : memref<16x128xf32, #tpu.memory_space<vmem>>, vector<16x128xf32>
    %c0_2 = arith.constant 0 : index
    %c0_3 = arith.constant 0 : index
    %4 = vector.load %arg5[%c0_2, %c0_3] : memref<128x128xf32, #tpu.memory_space<vmem>>, vector<128x128xf32>
    %cst = arith.constant dense<0.000000e+00> : vector<16x128xf32>
    %5 = tpu.matmul %3, %4, %cst {dimension_numbers = #tpu.dot_dimension_numbers<[1], [0], [0], [1], [0, 0, 1, 1], [], []>} : vector<16x128xf32>, vector<128x128xf32>, vector<16x128xf32> -> vector<16x128xf32>
    %c0_4 = arith.constant 0 : index
    %c0_5 = arith.constant 0 : index
    %6 = vector.load %arg6[%c0_4, %c0_5] : memref<1x128xf32, #tpu.memory_space<vmem>>, vector<1x128xf32>
    %7 = vector.broadcast %6 : vector<1x128xf32> to vector<16x128xf32>
    %8 = arith.addf %5, %7 : vector<16x128xf32>
    %c0_6 = arith.constant 0 : index
    %c0_7 = arith.constant 0 : index
    %9 = vector.load %arg7[%c0_6, %c0_7] : memref<16x128xf32, #tpu.memory_space<vmem>>, vector<16x128xf32>
    tpu.vector_store %arg7[%c0_6, %c0_7], %8 {strides = array<i32>} : memref<16x128xf32, #tpu.memory_space<vmem>>, vector<16x128xf32>,
    return
  }
  func.func @transform_0(%arg0: i32, %arg1: i32) -> (i32, i32) {
    %c0_i32 = arith.constant 0 : i32
    %c0_i32_0 = arith.constant 0 : i32
    return %arg0, %c0_i32 : i32, i32
  }
  func.func @transform_1(%arg0: i32, %arg1: i32) -> (i32, i32) {
    %c0_i32 = arith.constant 0 : i32
    %c0_i32_0 = arith.constant 0 : i32
    %c0_i32_1 = arith.constant 0 : i32
    return %c0_i32, %c0_i32_0 : i32, i32
  }
  func.func @transform_2(%arg0: i32, %arg1: i32) -> (i32, i32) {
    %c0_i32 = arith.constant 0 : i32
    %c0_i32_0 = arith.constant 0 : i32
    %c0_i32_1 = arith.constant 0 : i32
    return %c0_i32, %c0_i32_0 : i32, i32
  }
  func.func @transform_3(%arg0: i32, %arg1: i32) -> (i32, i32) {
    %c0_i32 = arith.constant 0 : i32
    %c0_i32_0 = arith.constant 0 : i32
    return %c0_i32, %arg1 : i32, i32
  }
  func.func @transform_4(%arg0: i32, %arg1: i32) -> (i32, i32) {
    %c0_i32 = arith.constant 0 : i32
    %c0_i32_0 = arith.constant 0 : i32
    return %c0_i32, %arg1 : i32, i32
  }
  func.func @transform_5(%arg0: i32, %arg1: i32) -> (i32, i32) {
    %c0_i32 = arith.constant 0 : i32
    return %arg0, %arg1 : i32, i32
  }
}

</mosaic_0001>

<llo_original>
// kernel: tpu_custom_call.1
$region0: #{tpu_custom_call.1}
  #allocation0 [shape = 'u32[]', space=smem, size = 0x4, offset = 0x4, fixed_abs, tag = 'smem constant byte address 0x4 - core index']
  #allocation1 [shape = 'u32[144,128]{1,0:T(1,128)}', space=vmem, size = 0x12000, scoped, tag = 'internal scratch']
  #allocation2 [shape = 'f32[16,128]{1,0:T(8,128)}', space=vmem, size = 0x2000, scoped, tag = 'scratch operand']
  %s0 = inlined_call_operand.hbm [shape: f32[16,128], index: 0, kind: input, shape index: {}]
  %s1 = inlined_call_operand.hbm [shape: f32[128,128], index: 1, kind: input, shape index: {}]
  %s2 = inlined_call_operand.vmem [shape: f32[1,128], index: 2, kind: input, shape index: {}]
  %s3 = inlined_call_operand.hbm [shape: f32[128,128], index: 3, kind: input, shape index: {}]
  %s4 = inlined_call_operand.vmem [shape: f32[1,128], index: 4, kind: input, shape index: {}]
  %s5 = inlined_call_operand.hbm [shape: f32[16,128], index: 5, kind: output, shape index: {}]
  %s6 = sld [smem:[#allocation0]]
  $region46: #{tpu_custom_call.1} parent=0
    _
  %s8 = ssub.s32 1, %s6
  %s9 = scalar_select 0, %s8, %s6
  $region1: #{tpu_custom_call.1} parent=0
    #allocation3 [shape = 'u8[8192]{0}', space=vmem, size = 0x2000, scoped, tag = 'input window, operand 0, single buffered']
    #allocation4 [shape = 's32[1]{0}', space=sflag, size = 0x4, scoped, tag = 'scoped memory for tpu_custom_call.1']
    #allocation5 [shape = 's32[1]{0}', space=sflag, size = 0x4, scoped, tag = 'scoped memory for tpu_custom_call.1']
    #allocation6 [shape = 'u8[65536]{0}', space=vmem, size = 0x10000, scoped, tag = 'input window, operand 1, single buffered']
    #allocation7 [shape = 's32[1]{0}', space=sflag, size = 0x4, scoped, tag = 'scoped memory for tpu_custom_call.1']
    #allocation8 [shape = 'u8[65536]{0}', space=vmem, size = 0x10000, scoped, tag = 'input window, operand 3, single buffered']
    #allocation9 [shape = 'u8[8192]{0}', space=vmem, size = 0x2000, scoped, tag = 'output window, operand 0, single buffered']
    %10 = vsyncpa [#allocation4], 0
    %11 = vsyncpa [#allocation7], 0
    %12 = vsyncpa [#allocation5], 0
    // Predicated region
    $region2: #{tpu_custom_call.1} parent=1 // pred_check
      _
    $region3: #{tpu_custom_call.1} parent=1 // pred_check_branch
      %14 = sbr.rel (0) target = $region5
    $region4: #{tpu_custom_call.1} parent=1 // pred_region
      %s16 = ssub.s32 256, 256
      %17 = vsyncadd [#allocation4], %s16
      %s18 = sshll.u32 [#allocation3], 4
      %s19 = int_to_ptr.vmem [resolvable:$true] %s18
      %24 = dma.hbm_to_vmem [thread:$0]  %s0, 256, %s19, [#allocation4], 128, 128, 8
    $region5: #{tpu_custom_call.1} parent=1 // pred_fallthru
      _
    // Predicated region
    $region6: #{tpu_custom_call.1} parent=1 // pred_check
      _
    $region7: #{tpu_custom_call.1} parent=1 // pred_check_branch
      %26 = sbr.rel (0) target = $region9
    $region8: #{tpu_custom_call.1} parent=1 // pred_region
      %s28 = ssub.s32 2048, 2048
      %29 = vsyncadd [#allocation7], %s28
      %s30 = sshll.u32 [#allocation6], 4
      %s31 = int_to_ptr.vmem [resolvable:$true] %s30
      %36 = dma.hbm_to_vmem [thread:$0]  %s1, 2048, %s31, [#allocation7], 128, 128, 8
    $region9: #{tpu_custom_call.1} parent=1 // pred_fallthru
      _
    // Predicated region
    $region10: #{tpu_custom_call.1} parent=1 // pred_check
      _
    $region11: #{tpu_custom_call.1} parent=1 // pred_check_branch
      %38 = sbr.rel (0) target = $region13
    $region12: #{tpu_custom_call.1} parent=1 // pred_region
      _
    $region13: #{tpu_custom_call.1} parent=1 // pred_fallthru
      _
    // Predicated region
    $region14: #{tpu_custom_call.1} parent=1 // pred_check
      _
    $region15: #{tpu_custom_call.1} parent=1 // pred_check_branch
      %40 = sbr.rel (0) target = $region17
    $region16: #{tpu_custom_call.1} parent=1 // pred_region
      %s42 = ssub.s32 2048, 2048
      %43 = vsyncadd [#allocation7], %s42
      %s44 = sshll.u32 [#allocation8], 4
      %s45 = int_to_ptr.vmem [resolvable:$true] %s44
      %50 = dma.hbm_to_vmem [thread:$0]  %s3, 2048, %s45, [#allocation7], 128, 128, 8
    $region17: #{tpu_custom_call.1} parent=1 // pred_fallthru
      _
    // Predicated region
    $region18: #{tpu_custom_call.1} parent=1 // pred_check
      _
    $region19: #{tpu_custom_call.1} parent=1 // pred_check_branch
      %52 = sbr.rel (0) target = $region21
    $region20: #{tpu_custom_call.1} parent=1 // pred_region
      _
    $region21: #{tpu_custom_call.1} parent=1 // pred_fallthru
      _
    // Predicated region
    $region22: #{tpu_custom_call.1} parent=1 // pred_check
      _
    $region23: #{tpu_custom_call.1} parent=1 // pred_check_branch
      %54 = sbr.rel (0) target = $region25
    $region24: #{tpu_custom_call.1} parent=1 // pred_region
      %55 = dma.done [#allocation4], 256
    $region25: #{tpu_custom_call.1} parent=1 // pred_fallthru
      _
    // Predicated region
    $region26: #{tpu_custom_call.1} parent=1 // pred_check
      _
    $region27: #{tpu_custom_call.1} parent=1 // pred_check_branch
      %57 = sbr.rel (0) target = $region29
    $region28: #{tpu_custom_call.1} parent=1 // pred_region
      %58 = dma.done [#allocation7], 2048
    $region29: #{tpu_custom_call.1} parent=1 // pred_fallthru
      _
    // Predicated region
    $region30: #{tpu_custom_call.1} parent=1 // pred_check
      _
    $region31: #{tpu_custom_call.1} parent=1 // pred_check_branch
      %60 = sbr.rel (0) target = $region33
    $region32: #{tpu_custom_call.1} parent=1 // pred_region
      %61 = dma.done [#allocation7], 2048
    $region33: #{tpu_custom_call.1} parent=1 // pred_fallthru
      _
    %p62 = scmp.eq.s32.totalorder 0, 0
    // Predicated region
    $region34: #{tpu_custom_call.1} parent=1 // pred_check
      %p63 = pneg %p62
    $region35: #{tpu_custom_call.1} parent=1 // pred_check_branch
      %65 = sbr.rel (%p63) target = $region37
    $region36: #{tpu_custom_call.1} parent=1 // pred_region
      %v66 = vld [vmem:[#allocation3] sm:$0xff]
      %v67 = vld [vmem:[#allocation3 + $0x8] sm:$0xff]
      %v68 = vld [vmem:[#allocation6] sm:$0xff]
      %v69 = vld [vmem:[#allocation6 + $0x8] sm:$0xff]
      %v70 = vld [vmem:[#allocation6 + $0x10] sm:$0xff]
      %v71 = vld [vmem:[#allocation6 + $0x18] sm:$0xff]
      %v72 = vld [vmem:[#allocation6 + $0x20] sm:$0xff]
      %v73 = vld [vmem:[#allocation6 + $0x28] sm:$0xff]
      %v74 = vld [vmem:[#allocation6 + $0x30] sm:$0xff]
      %v75 = vld [vmem:[#allocation6 + $0x38] sm:$0xff]
      %v76 = vld [vmem:[#allocation6 + $0x40] sm:$0xff]
      %v77 = vld [vmem:[#allocation6 + $0x48] sm:$0xff]
      %v78 = vld [vmem:[#allocation6 + $0x50] sm:$0xff]
      %v79 = vld [vmem:[#allocation6 + $0x58] sm:$0xff]
      %v80 = vld [vmem:[#allocation6 + $0x60] sm:$0xff]
      %v81 = vld [vmem:[#allocation6 + $0x68] sm:$0xff]
      %v82 = vld [vmem:[#allocation6 + $0x70] sm:$0xff]
      %v83 = vld [vmem:[#allocation6 + $0x78] sm:$0xff]
      %v84 = vld [vmem:[%s2] sm:$0x1]
      %v86 = vlaneseq
      %v87 = vshrl.u32 %v86, 7
      %v88 = vsub.s32 0, %v87
      %v89 = vrot.slane %v84, %v88
      %91 = vmatprep.subr.mxu0 0.0
      %92 = vmatpush1.msra.mxu0 %v68
      %93 = vmatprep.subr.mxu0 0.0
      %94 = vmatpush1.msra.mxu0 %v69
      %95 = vmatprep.subr.mxu0 0.0
      %96 = vmatpush1.msra.mxu0 %v70
      %97 = vmatprep.subr.mxu0 0.0
      %98 = vmatpush1.msra.mxu0 %v71
      %99 = vmatprep.subr.mxu0 0.0
      %100 = vmatpush1.msra.mxu0 %v72
      %101 = vmatprep.subr.mxu0 0.0
      %102 = vmatpush1.msra.mxu0 %v73
      %103 = vmatprep.subr.mxu0 0.0
      %104 = vmatpush1.msra.mxu0 %v74
      %105 = vmatprep.subr.mxu0 0.0
      %106 = vmatpush1.msra.mxu0 %v75
      %107 = vmatprep.subr.mxu0 0.0
      %108 = vmatpush1.msra.mxu0 %v76
      %109 = vmatprep.subr.mxu0 0.0
      %110 = vmatpush1.msra.mxu0 %v77
      %111 = vmatprep.subr.mxu0 0.0
      %112 = vmatpush1.msra.mxu0 %v78
      %113 = vmatprep.subr.mxu0 0.0
      %114 = vmatpush1.msra.mxu0 %v79
      %115 = vmatprep.subr.mxu0 0.0
      %116 = vmatpush1.msra.mxu0 %v80
      %117 = vmatprep.subr.mxu0 0.0
      %118 = vmatpush1.msra.mxu0 %v81
      %119 = vmatprep.subr.mxu0 0.0
      %120 = vmatpush1.msra.mxu0 %v82
      %121 = vmatprep.subr.mxu0 0.0
      %122 = vmatpush1.msra.mxu0 %v83
      %123 = vmatprep.subr.mxu0 0.0
      %124 = vmatpush1.msra.mxu0 0.0
      %125 = vmatprep.subr.mxu0 0.0
      %126 = vmatpush1.msra.mxu0 0.0
      %127 = vmatprep.subr.mxu0 0.0
      %128 = vmatpush1.msra.mxu0 0.0
      %129 = vmatprep.subr.mxu0 0.0
      %130 = vmatpush1.msra.mxu0 0.0
      %131 = vmatprep.subr.mxu0 0.0
      %132 = vmatpush1.msra.mxu0 0.0
      %133 = vmatprep.subr.mxu0 0.0
      %134 = vmatpush1.msra.mxu0 0.0
      %135 = vmatprep.subr.mxu0 0.0
      %136 = vmatpush1.msra.mxu0 0.0
      %137 = vmatprep.subr.mxu0 0.0
      %138 = vmatpush1.msra.mxu0 0.0
      %139 = vmatprep.subr.mxu0 0.0
      %140 = vmatpush1.msra.mxu0 0.0
      %141 = vmatprep.subr.mxu0 0.0
      %142 = vmatpush1.msra.mxu0 0.0
      %143 = vmatprep.subr.mxu0 0.0
      %144 = vmatpush1.msra.mxu0 0.0
      %145 = vmatprep.subr.mxu0 0.0
      %146 = vmatpush1.msra.mxu0 0.0
      %147 = vmatprep.subr.mxu0 0.0
      %148 = vmatpush1.msra.mxu0 0.0
      %149 = vmatprep.subr.mxu0 0.0
      %150 = vmatpush1.msra.mxu0 0.0
      %151 = vmatprep.subr.mxu0 0.0
      %152 = vmatpush1.msra.mxu0 0.0
      %153 = vmatprep.subr.mxu0 0.0
      %154 = vmatpush1.msra.mxu0 0.0
      %155 = vmatprep.mubr.f32.mxu0 0.0
      %156 = vmatmul.mubr.f32.gmra.mrb[0].mxu0 %v66
      %v157 = vpop.f32.mrb[0].mxu0
      %v158 = vadd.f32 %v89, %v157
      %v159 = vpop.f32.mrb[0].mxu0
      %160 = vmatprep.mubr.f32.mxu0 0.0
      %161 = vmatmul.mubr.f32.gmra.mrb[0].mxu0 %v67
      %v162 = vpop.f32.mrb[0].mxu0
      %v163 = vadd.f32 %v89, %v162
      %v164 = vpop.f32.mrb[0].mxu0
      %165 = vdwg.mxu0
      %v166 = vmul.f32 %v158, 0.5
      %v167 = vmul.f32 %v163, 0.5
      %v168 = vmul.f32 %v158, 0.70710677
      %v169 = vmul.f32 %v163, 0.70710677
      %v170 = verf.f32.pop %v168
      %v171 = verf.f32.pop %v169
      %v172 = vadd.f32 %v170, 1.0
      %v173 = vadd.f32 %v171, 1.0
      %v174 = vmul.f32 %v166, %v172
      %v175 = vmul.f32 %v167, %v173
      %176 = vst [vmem:[#allocation2] sm:$0xff] %v174
      %177 = vst [vmem:[#allocation2 + $0x8] sm:$0xff] %v175
    $region37: #{tpu_custom_call.1} parent=1 // pred_fallthru
      _
    %v178 = vld [vmem:[#allocation2] sm:$0xff]
    %v179 = vld [vmem:[#allocation2 + $0x8] sm:$0xff]
    %v180 = vld [vmem:[#allocation8] sm:$0xff]
    %v181 = vld [vmem:[#allocation8 + $0x8] sm:$0xff]
    %v182 = vld [vmem:[#allocation8 + $0x10] sm:$0xff]
    %v183 = vld [vmem:[#allocation8 + $0x18] sm:$0xff]
    %v184 = vld [vmem:[#allocation8 + $0x20] sm:$0xff]
    %v185 = vld [vmem:[#allocation8 + $0x28] sm:$0xff]
    %v186 = vld [vmem:[#allocation8 + $0x30] sm:$0xff]
    %v187 = vld [vmem:[#allocation8 + $0x38] sm:$0xff]
    %v188 = vld [vmem:[#allocation8 + $0x40] sm:$0xff]
    %v189 = vld [vmem:[#allocation8 + $0x48] sm:$0xff]
    %v190 = vld [vmem:[#allocation8 + $0x50] sm:$0xff]
    %v191 = vld [vmem:[#allocation8 + $0x58] sm:$0xff]
    %v192 = vld [vmem:[#allocation8 + $0x60] sm:$0xff]
    %v193 = vld [vmem:[#allocation8 + $0x68] sm:$0xff]
    %v194 = vld [vmem:[#allocation8 + $0x70] sm:$0xff]
    %v195 = vld [vmem:[#allocation8 + $0x78] sm:$0xff]
    %v196 = vld [vmem:[%s4] sm:$0x1]
    %v198 = vlaneseq
    %v199 = vshrl.u32 %v198, 7
    %v200 = vsub.s32 0, %v199
    %v201 = vrot.slane %v196, %v200
    %203 = vmatprep.subr.mxu0 0.0
    %204 = vmatpush1.msra.mxu0 %v180
    %205 = vmatprep.subr.mxu0 0.0
    %206 = vmatpush1.msra.mxu0 %v181
    %207 = vmatprep.subr.mxu0 0.0
    %208 = vmatpush1.msra.mxu0 %v182
    %209 = vmatprep.subr.mxu0 0.0
    %210 = vmatpush1.msra.mxu0 %v183
    %211 = vmatprep.subr.mxu0 0.0
    %212 = vmatpush1.msra.mxu0 %v184
    %213 = vmatprep.subr.mxu0 0.0
    %214 = vmatpush1.msra.mxu0 %v185
    %215 = vmatprep.subr.mxu0 0.0
    %216 = vmatpush1.msra.mxu0 %v186
    %217 = vmatprep.subr.mxu0 0.0
    %218 = vmatpush1.msra.mxu0 %v187
    %219 = vmatprep.subr.mxu0 0.0
    %220 = vmatpush1.msra.mxu0 %v188
    %221 = vmatprep.subr.mxu0 0.0
    %222 = vmatpush1.msra.mxu0 %v189
    %223 = vmatprep.subr.mxu0 0.0
    %224 = vmatpush1.msra.mxu0 %v190
    %225 = vmatprep.subr.mxu0 0.0
    %226 = vmatpush1.msra.mxu0 %v191
    %227 = vmatprep.subr.mxu0 0.0
    %228 = vmatpush1.msra.mxu0 %v192
    %229 = vmatprep.subr.mxu0 0.0
    %230 = vmatpush1.msra.mxu0 %v193
    %231 = vmatprep.subr.mxu0 0.0
    %232 = vmatpush1.msra.mxu0 %v194
    %233 = vmatprep.subr.mxu0 0.0
    %234 = vmatpush1.msra.mxu0 %v195
    %235 = vmatprep.subr.mxu0 0.0
    %236 = vmatpush1.msra.mxu0 0.0
    %237 = vmatprep.subr.mxu0 0.0
    %238 = vmatpush1.msra.mxu0 0.0
    %239 = vmatprep.subr.mxu0 0.0
    %240 = vmatpush1.msra.mxu0 0.0
    %241 = vmatprep.subr.mxu0 0.0
    %242 = vmatpush1.msra.mxu0 0.0
    %243 = vmatprep.subr.mxu0 0.0
    %244 = vmatpush1.msra.mxu0 0.0
    %245 = vmatprep.subr.mxu0 0.0
    %246 = vmatpush1.msra.mxu0 0.0
    %247 = vmatprep.subr.mxu0 0.0
    %248 = vmatpush1.msra.mxu0 0.0
    %249 = vmatprep.subr.mxu0 0.0
    %250 = vmatpush1.msra.mxu0 0.0
    %251 = vmatprep.subr.mxu0 0.0
    %252 = vmatpush1.msra.mxu0 0.0
    %253 = vmatprep.subr.mxu0 0.0
    %254 = vmatpush1.msra.mxu0 0.0
    %255 = vmatprep.subr.mxu0 0.0
    %256 = vmatpush1.msra.mxu0 0.0
    %257 = vmatprep.subr.mxu0 0.0
    %258 = vmatpush1.msra.mxu0 0.0
    %259 = vmatprep.subr.mxu0 0.0
    %260 = vmatpush1.msra.mxu0 0.0
    %261 = vmatprep.subr.mxu0 0.0
    %262 = vmatpush1.msra.mxu0 0.0
    %263 = vmatprep.subr.mxu0 0.0
    %264 = vmatpush1.msra.mxu0 0.0
    %265 = vmatprep.subr.mxu0 0.0
    %266 = vmatpush1.msra.mxu0 0.0
    %267 = vmatprep.mubr.f32.mxu0 0.0
    %268 = vmatmul.mubr.f32.gmra.mrb[0].mxu0 %v178
    %v269 = vpop.f32.mrb[0].mxu0
    %v270 = vadd.f32 %v201, %v269
    %v271 = vpop.f32.mrb[0].mxu0
    %272 = vmatprep.mubr.f32.mxu0 0.0
    %273 = vmatmul.mubr.f32.gmra.mrb[0].mxu0 %v179
    %v274 = vpop.f32.mrb[0].mxu0
    %v275 = vadd.f32 %v201, %v274
    %v276 = vpop.f32.mrb[0].mxu0
    %277 = vdwg.mxu0
    %278 = vst [vmem:[#allocation9] sm:$0xff] %v270
    %279 = vst [vmem:[#allocation9 + $0x8] sm:$0xff] %v275
    // Predicated region
    $region38: #{tpu_custom_call.1} parent=1 // pred_check
      _
    $region39: #{tpu_custom_call.1} parent=1 // pred_check_branch
      %281 = sbr.rel (0) target = $region41
    $region40: #{tpu_custom_call.1} parent=1 // pred_region
      %s283 = ssub.s32 256, 256
      %284 = vsyncadd [#allocation5], %s283
      %s285 = sshll.u32 [#allocation9], 4
      %s286 = int_to_ptr.vmem [resolvable:$true] %s285
      %291 = dma.vmem_to_hbm [thread:$0]  %s286, 256, %s5, [#allocation5], 128, 128, 8
    $region41: #{tpu_custom_call.1} parent=1 // pred_fallthru
      _
    // Predicated region
    $region42: #{tpu_custom_call.1} parent=1 // pred_check
      _
    $region43: #{tpu_custom_call.1} parent=1 // pred_check_branch
      %293 = sbr.rel (0) target = $region45
    $region44: #{tpu_custom_call.1} parent=1 // pred_region
      %294 = dma.done [#allocation5], 256
    $region45: #{tpu_custom_call.1} parent=1 // pred_fallthru
      _
    %295 = vsyncpa [#allocation4], 1
    %296 = vsyncpa [#allocation7], 1
    %297 = vsyncpa [#allocation5], 1

</llo_original>
